<compile_context>
chip_gen: v5e
topology: v5e:2x2
jax: 0.10.0
libtpu: 0.0.40
codegen_flags: <defaults>
</compile_context>

<pallas_src>
import jax
import jax.numpy as jnp
from jax.experimental import pallas as pl
from jax.experimental.pallas import tpu as pltpu


def _round_up(x: int, m: int) -> int:
    return ((x + m - 1) // m) * m


def _make_wlp_kernel_acc_in_out():
    """float32 I/O: accumulate directly into the resident output block."""

    def kernel(w_ref, x_ref, o_ref):
        # w_ref: SMEM (num_layers_used,) f32, pre-normalized by sum(w)
        # x_ref: VMEM (T, H) f32 -- one layer's token tile (layer dim squeezed)
        # o_ref: VMEM (T, H) f32 -- resident across the layer axis (accumulator);
        #        written back to HBM once, when the token-tile index advances.
        l = pl.program_id(1)
        wx = w_ref[l] * x_ref[...]

        @pl.when(l == 0)
        def _first():
            o_ref[...] = wx

        @pl.when(l > 0)
        def _rest():
            o_ref[...] += wx

    return kernel


def _make_wlp_kernel_scratch(num_layers_used: int):
    """Sub-32-bit I/O (e.g. bf16): accumulate in f32 scratch, cast on last step."""

    def kernel(w_ref, x_ref, o_ref, acc_ref):
        l = pl.program_id(1)
        wx = w_ref[l] * x_ref[...].astype(jnp.float32)

        @pl.when(l == 0)
        def _first():
            acc_ref[...] = wx

        @pl.when(l > 0)
        def _rest():
            acc_ref[...] += wx

        @pl.when(l == num_layers_used - 1)
        def _finalize():
            o_ref[...] = acc_ref[...].astype(o_ref.dtype)

    return kernel


def weighted_layer_pooling(
    all_hidden_states,
    layer_weights,
    layer_start: int = 4,
    *,
    token_tile: int = 2048,
    vmem_buffer_budget_bytes: int = 40 * 1024 * 1024,
):
    """JAX/Pallas equivalent of WeightedLayerPooling.forward.

    all_hidden_states: (num_hidden_layers + 1, B, S, H), f32 or bf16
    layer_weights:     (num_hidden_layers + 1 - layer_start,) f32
    returns:           (B, S, H) in all_hidden_states.dtype
    """
    L, B, S, H = all_hidden_states.shape
    num_layers_used = L - layer_start
    assert layer_weights.shape == (num_layers_used,)
    assert num_layers_used >= 1

    dtype = all_hidden_states.dtype
    itemsize = jnp.dtype(dtype).itemsize
    use_scratch = dtype != jnp.float32

    # Collapse batch/seq into a single token axis; keep H lane-dense (untiled).
    N = B * S
    x = all_hidden_states.reshape(L, N, H)

    # Pre-normalize the weights outside the kernel (removes the finalize divide).
    w = (layer_weights / jnp.sum(layer_weights)).astype(jnp.float32)

    # Sublane alignment for the token-tile dim (f32: 8, bf16: 16, int8/fp8: 32).
    sub = max(8, 32 // itemsize)

    # VMEM bytes consumed per token row of the tile:
    #   2x input double-buffer + 2x output double-buffer (+ f32 scratch if used)
    per_row = 4 * H * itemsize + (4 * H if use_scratch else 0)
    t_budget = max(sub, (vmem_buffer_budget_bytes // per_row) // sub * sub)

    T = min(_round_up(token_tile, sub), _round_up(N, sub), t_budget)
    # Guarantee >= 2 token tiles when there is enough work so the "parallel"
    # token axis can occupy both TensorCores on 2-TC chips (v7x).
    if N >= 2 * sub:
        T = min(T, _round_up(pl.cdiv(N, 2), sub))
    num_token_tiles = pl.cdiv(N, T)

    # Explicit scoped-VMEM limit: actual buffer footprint + headroom, clamped
    # to fit v7x's 64 MiB physical VMEM (and raising the 16/32 MiB scoped
    # defaults on v5e/v6e when a big tile needs it).
    buffer_bytes = int(T * per_row)
    vmem_limit = int(min(max(buffer_bytes + (8 << 20), 16 << 20), 48 << 20))

    if use_scratch:
        kernel = _make_wlp_kernel_scratch(num_layers_used)
        scratch_shapes = [pltpu.VMEM((T, H), jnp.float32)]
    else:
        kernel = _make_wlp_kernel_acc_in_out()
        scratch_shapes = []

    out = pl.pallas_call(
        kernel,
        out_shape=jax.ShapeDtypeStruct((N, H), dtype),
        grid=(num_token_tiles, num_layers_used),
        in_specs=[
            # tiny weight vector lives untiled in SMEM (scalar reads)
            pl.BlockSpec(memory_space=pltpu.MemorySpace.SMEM),
            # one (layer, token-tile) slab per step; layer_start folded into map
            pl.BlockSpec(
                (pl.Squeezed(), T, H),
                lambda t, l: (l + layer_start, t, 0),
            ),
        ],
        # same output block across the layer axis -> output stays resident and
        # is written back to HBM once per token tile.
        out_specs=pl.BlockSpec((T, H), lambda t, l: (t, 0)),
        scratch_shapes=scratch_shapes,
        compiler_params=pltpu.CompilerParams(
            dimension_semantics=("parallel", "arbitrary"),
            vmem_limit_bytes=vmem_limit,
        ),
    )(w, x)

    return out.reshape(B, S, H)


if __name__ == "__main__":
    # Small config consistent with the module: num_hidden_layers=6, layer_start=4
    num_hidden_layers = 6
    layer_start = 4
    B, S, H = 2, 8, 32
    L = num_hidden_layers + 1  # hidden-states stack includes the embedding layer

    key = jax.random.PRNGKey(0)
    k_x, k_w = jax.random.split(key)
    all_hidden_states = jax.random.normal(k_x, (L, B, S, H), dtype=jnp.float32)
    # Module default init is ones; use deterministic non-trivial weights to
    # exercise the weighting + normalization path (as if trained).
    layer_weights = 1.0 + 0.1 * jax.random.normal(
        k_w, (num_hidden_layers + 1 - layer_start,), dtype=jnp.float32
    )

    # --- f32 path (accumulate-in-output, no scratch) ---
    out = weighted_layer_pooling(all_hidden_states, layer_weights, layer_start)
    out = jax.block_until_ready(out)

    # Pure-JAX reference (mirrors the PyTorch forward exactly)
    sel = all_hidden_states[layer_start:]
    ref = (layer_weights[:, None, None, None] * sel).sum(axis=0) / layer_weights.sum()

    assert out.shape == (B, S, H), out.shape
    assert jnp.allclose(out, ref, atol=1e-5, rtol=1e-5), "f32 mismatch vs reference"

    # --- bf16 path (f32 scratch accumulator) ---
    x_bf16 = all_hidden_states.astype(jnp.bfloat16)
    out_bf16 = weighted_layer_pooling(x_bf16, layer_weights, layer_start)
    out_bf16 = jax.block_until_ready(out_bf16)

    sel_bf = x_bf16[layer_start:].astype(jnp.float32)
    ref_bf = (
        (layer_weights[:, None, None, None] * sel_bf).sum(axis=0)
        / layer_weights.sum()
    ).astype(jnp.bfloat16)
    assert out_bf16.shape == (B, S, H), out_bf16.shape
    assert jnp.allclose(
        out_bf16.astype(jnp.float32),
        ref_bf.astype(jnp.float32),
        atol=2e-2,
        rtol=2e-2,
    ), "bf16 mismatch vs reference"

    print("KERNEL_OK")
</pallas_src>

<mosaic_0001>
module attributes {stable_mosaic.version = 11 : i64} {
  func.func @kernel(%arg0: i32, %arg1: i32, %arg2: memref<3xf32, #tpu.memory_space<smem>>, %arg3: memref<1x8x32xf32, #tpu.memory_space<vmem>>, %arg4: memref<8x32xf32, #tpu.memory_space<vmem>>) attributes {dimension_semantics = [#tpu.dimension_semantics<parallel>, #tpu.dimension_semantics<arbitrary>], iteration_bounds = array<i64: 2, 3>, scalar_prefetch = 0 : i64, scratch_operands = 0 : i64, tpu.core_type = #tpu.core_type<tc>, window_params = [{transform_indices = @transform_0, window_bounds = array<i64: 3>}, {transform_indices = @transform_1, window_bounds = array<i64: 1, 8, 32>}, {transform_indices = @transform_2, window_bounds = array<i64: 8, 32>}]} {
    %0 = arith.index_cast %arg1 : i32 to index
    %1 = memref.load %arg2[%0] : memref<3xf32, #tpu.memory_space<smem>>
    %c0 = arith.constant 0 : index
    %c0_0 = arith.constant 0 : index
    %c0_1 = arith.constant 0 : index
    %2 = vector.load %arg3[%c0, %c0_0, %c0_1] : memref<1x8x32xf32, #tpu.memory_space<vmem>>, vector<1x8x32xf32>
    %3 = vector.shape_cast %2 : vector<1x8x32xf32> to vector<8x32xf32>
    %4 = vector.broadcast %1 : f32 to vector<8x32xf32>
    %5 = arith.mulf %4, %3 : vector<8x32xf32>
    %c0_i32 = arith.constant 0 : i32
    %6 = arith.cmpi eq, %arg1, %c0_i32 : i32
    %7 = arith.extui %6 : i1 to i32
    %c0_i32_2 = arith.constant 0 : i32
    %8 = arith.cmpi ne, %7, %c0_i32_2 : i32
    scf.if %8 {
      %c0_5 = arith.constant 0 : index
      %c0_6 = arith.constant 0 : index
      %12 = vector.load %arg4[%c0_5, %c0_6] : memref<8x32xf32, #tpu.memory_space<vmem>>, vector<8x32xf32>
      tpu.vector_store %arg4[%c0_5, %c0_6], %5 {strides = array<i32>} : memref<8x32xf32, #tpu.memory_space<vmem>>, vector<8x32xf32>,
    } else {
    }
    %c0_i32_3 = arith.constant 0 : i32
    %9 = arith.cmpi sgt, %arg1, %c0_i32_3 : i32
    %10 = arith.extui %9 : i1 to i32
    %c0_i32_4 = arith.constant 0 : i32
    %11 = arith.cmpi ne, %10, %c0_i32_4 : i32
    scf.if %11 {
      %c0_5 = arith.constant 0 : index
      %c0_6 = arith.constant 0 : index
      %12 = vector.load %arg4[%c0_5, %c0_6] : memref<8x32xf32, #tpu.memory_space<vmem>>, vector<8x32xf32>
      %13 = arith.addf %12, %5 : vector<8x32xf32>
      %c0_7 = arith.constant 0 : index
      %c0_8 = arith.constant 0 : index
      %14 = vector.load %arg4[%c0_7, %c0_8] : memref<8x32xf32, #tpu.memory_space<vmem>>, vector<8x32xf32>
      tpu.vector_store %arg4[%c0_7, %c0_8], %13 {strides = array<i32>} : memref<8x32xf32, #tpu.memory_space<vmem>>, vector<8x32xf32>,
    } else {
    }
    return
  }
  func.func @transform_0(%arg0: i32, %arg1: i32) -> i32 {
    %c0_i32 = arith.constant 0 : i32
    %c0_i32_0 = arith.constant 0 : i32
    return %c0_i32 : i32
  }
  func.func @transform_1(%arg0: i32, %arg1: i32) -> (i32, i32, i32) {
    %c4_i32 = arith.constant 4 : i32
    %0 = arith.addi %arg1, %c4_i32 : i32
    %c0_i32 = arith.constant 0 : i32
    %c0_i32_0 = arith.constant 0 : i32
    return %0, %arg0, %c0_i32 : i32, i32, i32
  }
  func.func @transform_2(%arg0: i32, %arg1: i32) -> (i32, i32) {
    %c0_i32 = arith.constant 0 : i32
    %c0_i32_0 = arith.constant 0 : i32
    return %arg0, %c0_i32 : i32, i32
  }
}

</mosaic_0001>

<llo_original>
// kernel: tpu_custom_call.1
$region0: #{tpu_custom_call.1}
  #allocation0 [shape = 'u32[]', space=smem, size = 0x4, offset = 0x4, fixed_abs, tag = 'smem constant byte address 0x4 - core index']
  #allocation1 [shape = 'u32[72,128]{1,0:T(1,128)}', space=vmem, size = 0x9000, scoped, tag = 'internal scratch']
  %s0 = inlined_call_operand.hbm [shape: f32[3], index: 0, kind: input, shape index: {}]
  %s1 = inlined_call_operand.hbm [shape: f32[7,16,32], index: 1, kind: input, shape index: {}]
  %s2 = inlined_call_operand.hbm [shape: f32[16,32], index: 2, kind: output, shape index: {}]
  %s3 = sld [smem:[#allocation0]]
  $region57: #{tpu_custom_call.1} parent=0
    _
  %s5 = ssub.s32 1, %s3
  %s6 = scalar_select 0, %s5, %s3
  $region1: #{tpu_custom_call.1} parent=0
    #allocation2 [shape = 'u8[512]{0}', space=smem, size = 0x200, scoped, tag = 'input window, operand 0, single buffered']
    #allocation3 [shape = 's32[2]{0}', space=sflag, size = 0x8, scoped, tag = 'scoped memory for tpu_custom_call.1']
    #allocation4 [shape = 's32[2]{0}', space=sflag, size = 0x8, scoped, tag = 'scoped memory for tpu_custom_call.1']
    #allocation5 [shape = 's32[2]{0}', space=sflag, size = 0x8, scoped, tag = 'scoped memory for tpu_custom_call.1']
    #allocation6 [shape = 'u8[8192]{0}', space=vmem, size = 0x2000, scoped, tag = 'input window, operand 1']
    #allocation7 [shape = 'u8[8192]{0}', space=vmem, size = 0x2000, scoped, tag = 'output window, operand 0']
    %7 = vsyncpa [#allocation5], 0
    %8 = vsyncpa [#allocation3], 0
    %s9 = scalar_lea.sflag [#allocation3], 1
    %10 = vsyncpa %s9, 0
    %11 = vsyncpa [#allocation4], 0
    %s12 = scalar_lea.sflag [#allocation4], 1
    %13 = vsyncpa %s12, 0
    loop: start=0, step=1, limit=8
    $region2: #{tpu_custom_call.1} parent=1 // loop_pre_header
      _
    $region3: #{tpu_custom_call.1} parent=1 // loop_header
      %s15 = sphi 0, %s19
      %p16 = scmp.ge.s32.totalorder %s15, 8
      %s22 = sphi 0, %s34
      %s23 = sphi 0, %s30
      %s24 = sphi 0, %s22
      %s25 = sphi 0, %s23
      %s26 = sphi 0, %s24
      %s27 = sphi 0, %s25
      %s35 = sphi 0, %s35
      %s37 = sphi 0, %s35
      %s38 = sphi 0, %s37
      %s52 = sphi 0, %s38
      %s62 = sphi 0, %s64
      %s65 = sphi 0, %s62
      %s66 = sphi 0, %s65
      %s82 = sphi 0, %s66
      %s88 = sphi 0, %s90
      %s91 = sphi 0, %s88
      %s92 = sphi 0, %s91
      %s108 = sphi 0, %s92
    $region4: #{tpu_custom_call.1} parent=1 // loop_header_branch
      %18 = sbr.rel (%p16) target = $region8
    $region5: #{tpu_custom_call.1} parent=1 // loop_body
      %s20 = ssub.s32 %s15, 1
      %s21 = ssub.s32 %s15, 2
      %s28 = sadd.s32 1, %s23
      %p29 = scmp.ge.s32.totalorder %s28, 3
      %s30 = scalar_select %p29, 0, %s28
      %s31 = sadd.s32 1, %s22
      %s32 = scalar_select %p29, %s31, %s22
      %p33 = scmp.ge.s32.totalorder %s32, 2
      %s34 = scalar_select %p33, 0, %s32
      %s36 = sadd.s32 %s35, 1
      %p39 = scmp.eq.s32.totalorder %s15, 5
      %p40 = scmp.ne.s32.totalorder %s35, %s37
      %p41 = scmp.eq.s32.totalorder %s15, 0
      %p42 = por %p40, %p41
      %p43 = scmp.ne.s32.totalorder %s35, %s37
      %p44 = scmp.eq.s32.totalorder %s20, 5
      %p45 = por %p43, %p44
      %p46 = scmp.ne.s32.totalorder %s37, %s38
      %p47 = scmp.eq.s32.totalorder %s20, 0
      %p48 = por %p46, %p47
      %p49 = scmp.ne.s32.totalorder %s37, %s38
      %p50 = scmp.eq.s32.totalorder %s21, 5
      %p51 = por %p49, %p50
      %p53 = scmp.ne.s32.totalorder %s38, %s52
      %p54 = scmp.eq.s32.totalorder %s21, 0
      %p55 = por %p53, %p54
      %s56 = sadd.s32 %s23, 4
      %s57 = sadd.s32 %s30, 4
      %s58 = ssub.s32 %s56, %s57
      %s59 = ssub.s32 %s22, %s34
      %s60 = sor.u32 %s58, %s59
      %p61 = scmp.eq.s32.totalorder %s60, 0
      %s63 = sadd.s32 %s62, 1
      %s64 = scalar_select %p61, %s62, %s63
      %p67 = pneg %p61
      %p68 = scmp.eq.s32.totalorder %s15, 5
      %p69 = por %p67, %p68
      %p70 = scmp.ne.s32.totalorder %s62, %s65
      %p71 = scmp.eq.s32.totalorder %s15, 0
      %p72 = por %p70, %p71
      %p73 = scmp.ne.s32.totalorder %s62, %s65
      %p74 = scmp.eq.s32.totalorder %s20, 5
      %p75 = por %p73, %p74
      %p76 = scmp.ne.s32.totalorder %s65, %s66
      %p77 = scmp.eq.s32.totalorder %s20, 0
      %p78 = por %p76, %p77
      %p79 = scmp.ne.s32.totalorder %s65, %s66
      %p80 = scmp.eq.s32.totalorder %s21, 5
      %p81 = por %p79, %p80
      %p83 = scmp.ne.s32.totalorder %s66, %s82
      %p84 = scmp.eq.s32.totalorder %s21, 0
      %p85 = por %p83, %p84
      %s86 = ssub.s32 %s22, %s34
      %p87 = scmp.eq.s32.totalorder %s86, 0
      %s89 = sadd.s32 %s88, 1
      %s90 = scalar_select %p87, %s88, %s89
      %p93 = pneg %p87
      %p94 = scmp.eq.s32.totalorder %s15, 5
      %p95 = por %p93, %p94
      %p96 = scmp.ne.s32.totalorder %s88, %s91
      %p97 = scmp.eq.s32.totalorder %s15, 0
      %p98 = por %p96, %p97
      %p99 = scmp.ne.s32.totalorder %s88, %s91
      %p100 = scmp.eq.s32.totalorder %s20, 5
      %p101 = por %p99, %p100
      %p102 = scmp.ne.s32.totalorder %s91, %s92
      %p103 = scmp.eq.s32.totalorder %s20, 0
      %p104 = por %p102, %p103
      %p105 = scmp.ne.s32.totalorder %s91, %s92
      %p106 = scmp.eq.s32.totalorder %s21, 5
      %p107 = por %p105, %p106
      %p109 = scmp.ne.s32.totalorder %s92, %s108
      %p110 = scmp.eq.s32.totalorder %s21, 0
      %p111 = por %p109, %p110
      %p112 = scmp.le.s32.totalorder 1, %s15
      %p113 = scmp.lt.s32.totalorder %s15, 7
      %p114 = pnand %p112, %p113
      %p115 = pneg %p114
      // Predicated region
      $region9: #{tpu_custom_call.1} parent=5 // pred_check
        _
      $region10: #{tpu_custom_call.1} parent=5 // pred_check_branch
        %117 = sbr.rel (%p114) target = $region12
      $region11: #{tpu_custom_call.1} parent=5 // pred_region
        %s118 = ssub.s32 %s15, 1
        // Predicated region
        $region13: #{tpu_custom_call.1} parent=11 // pred_check
          %p119 = pneg %p48
        $region14: #{tpu_custom_call.1} parent=11 // pred_check_branch
          %121 = sbr.rel (%p119) target = $region16
        $region15: #{tpu_custom_call.1} parent=11 // pred_region
          %123 = vsyncadd [#allocation5], 0
          %s125 = sshll.u32 %s0, 4
          %s126 = int_to_ptr.hbm [resolvable:$true] %s125
          %128 = dma.hbm_to_smem %s126, 16, [#allocation2], [#allocation5]
        $region16: #{tpu_custom_call.1} parent=11 // pred_fallthru
          _
      $region12: #{tpu_custom_call.1} parent=5 // pred_fallthru
        _
      %p129 = scmp.lt.s32.totalorder %s15, 6
      // Predicated region
      $region17: #{tpu_custom_call.1} parent=5 // pred_check
        %p130 = pneg %p129
      $region18: #{tpu_custom_call.1} parent=5 // pred_check_branch
        %132 = sbr.rel (%p130) target = $region20
      $region19: #{tpu_custom_call.1} parent=5 // pred_region
        // Predicated region
        $region21: #{tpu_custom_call.1} parent=19 // pred_check
          %p133 = pneg %p72
        $region22: #{tpu_custom_call.1} parent=19 // pred_check_branch
          %135 = sbr.rel (%p133) target = $region24
        $region23: #{tpu_custom_call.1} parent=19 // pred_region
          %s136 = sand.u32 %s62, 1
          %s137 = scalar_lea.sflag [#allocation3], %s136
          %s138 = sand.u32 %s62, 1
          %s139 = smul.addr %s138, 8
          %s140 = scalar_lea.vmem [#allocation6], %s139
          %s141 = sadd.s32 %s23, 4
          %143 = vsyncadd %s137, 0
          %s144 = smul.addr %s141, 2
          %s145 = sadd.s32 %s22, %s144
          %s146 = smul.addr %s145, 8
          %s147 = scalar_lea.hbm %s1, %s146
          %s149 = sshll.u32 %s147, 4
          %s150 = int_to_ptr.hbm [resolvable:$true] %s149
          %s151 = sshll.u32 %s140, 4
          %s152 = int_to_ptr.vmem [resolvable:$true] %s151
          %154 = dma.hbm_to_vmem [thread:$0]  %s150, 128, %s152, %s137
        $region24: #{tpu_custom_call.1} parent=19 // pred_fallthru
          _
      $region20: #{tpu_custom_call.1} parent=5 // pred_fallthru
        _
      %p155 = scmp.le.s32.totalorder 1, %s15
      %p156 = scmp.lt.s32.totalorder %s15, 7
      %p157 = pnand %p155, %p156
      %p158 = pneg %p157
      // Predicated region
      $region25: #{tpu_custom_call.1} parent=5 // pred_check
        _
      $region26: #{tpu_custom_call.1} parent=5 // pred_check_branch
        %160 = sbr.rel (%p157) target = $region28
      $region27: #{tpu_custom_call.1} parent=5 // pred_region
        %s161 = ssub.s32 %s15, 1
        // Predicated region
        $region29: #{tpu_custom_call.1} parent=27 // pred_check
          %p162 = pneg %p48
        $region30: #{tpu_custom_call.1} parent=27 // pred_check_branch
          %164 = sbr.rel (%p162) target = $region32
        $region31: #{tpu_custom_call.1} parent=27 // pred_region
          %166 = dma.done [#allocation5], 16
        $region32: #{tpu_custom_call.1} parent=27 // pred_fallthru
          _
        %s167 = sand.u32 %s65, 1
        %s168 = scalar_lea.sflag [#allocation3], %s167
        %s169 = sand.u32 %s65, 1
        %s170 = smul.addr %s169, 8
        %s171 = scalar_lea.vmem [#allocation6], %s170
        // Predicated region
        $region33: #{tpu_custom_call.1} parent=27 // pred_check
          %p172 = pneg %p78
        $region34: #{tpu_custom_call.1} parent=27 // pred_check_branch
          %174 = sbr.rel (%p172) target = $region36
        $region35: #{tpu_custom_call.1} parent=27 // pred_region
          %176 = dma.done %s168, 128
        $region36: #{tpu_custom_call.1} parent=27 // pred_fallthru
          _
        %177 = sfence
        %p178 = pneg %p48
        %p179 = pneg %p45
        %s180 = sand.u32 %s65, 1
        %s181 = scalar_lea.sflag [#allocation3], %s180
        %s182 = sand.u32 %s65, 1
        %s183 = smul.addr %s182, 8
        %s184 = scalar_lea.vmem [#allocation6], %s183
        %p185 = pneg %p78
        %p186 = pneg %p75
        %p187 = pneg %p104
        %p188 = pneg %p101
        %s189 = sand.u32 %s91, 1
        %s190 = scalar_lea.sflag [#allocation4], %s189
        %s191 = sand.u32 %s91, 1
        %s192 = smul.addr %s191, 8
        %s193 = scalar_lea.vmem [#allocation7], %s192
        %s194 = sadd.s32 %s25, 4
        %s195 = sld [smem:[#allocation2 + %s25]]
        %v196 = vld [vmem:[%s171] sm:$0xff]
        %v197 = vstv %s195
        %v198 = vmul.f32 %v197, %v196
        %p199 = scmp.eq.s32.totalorder %s25, 0
        // Predicated region
        $region37: #{tpu_custom_call.1} parent=27 // pred_check
          %p200 = pneg %p199
        $region38: #{tpu_custom_call.1} parent=27 // pred_check_branch
          %202 = sbr.rel (%p200) target = $region40
        $region39: #{tpu_custom_call.1} parent=27 // pred_region
          %vm203 = vcmask 261120
          %204 = vst.msk [vmem:[%s193] sm:$0xff] %vm203, %v198
        $region40: #{tpu_custom_call.1} parent=27 // pred_fallthru
          _
        %p205 = scmp.gt.s32.totalorder %s25, 0
        // Predicated region
        $region41: #{tpu_custom_call.1} parent=27 // pred_check
          %p206 = pneg %p205
        $region42: #{tpu_custom_call.1} parent=27 // pred_check_branch
          %208 = sbr.rel (%p206) target = $region44
        $region43: #{tpu_custom_call.1} parent=27 // pred_region
          %v209 = vld [vmem:[%s193] sm:$0xff]
          %v210 = vadd.f32 %v209, %v198
          %vm211 = vcmask 261120
          %212 = vst.msk [vmem:[%s193] sm:$0xff] %vm211, %v210
        $region44: #{tpu_custom_call.1} parent=27 // pred_fallthru
          _
        %s213 = sand.u32 %s91, 1
        %s214 = scalar_lea.sflag [#allocation4], %s213
        %s215 = sand.u32 %s91, 1
        %s216 = smul.addr %s215, 8
        %s217 = scalar_lea.vmem [#allocation7], %s216
        // Predicated region
        $region45: #{tpu_custom_call.1} parent=27 // pred_check
          %p218 = pneg %p101
        $region46: #{tpu_custom_call.1} parent=27 // pred_check_branch
          %220 = sbr.rel (%p218) target = $region48
        $region47: #{tpu_custom_call.1} parent=27 // pred_region
          %222 = vsyncadd %s214, 0
          %s223 = smul.addr %s24, 8
          %s224 = scalar_lea.hbm %s2, %s223
          %s226 = sshll.u32 %s217, 4
          %s227 = int_to_ptr.vmem [resolvable:$true] %s226
          %s228 = sshll.u32 %s224, 4
          %s229 = int_to_ptr.hbm [resolvable:$true] %s228
          %231 = dma.vmem_to_hbm [thread:$0]  %s227, 128, %s229, %s214
        $region48: #{tpu_custom_call.1} parent=27 // pred_fallthru
          _
      $region28: #{tpu_custom_call.1} parent=5 // pred_fallthru
        _
      %p232 = scmp.le.s32.totalorder 2, %s15
      // Predicated region
      $region49: #{tpu_custom_call.1} parent=5 // pred_check
        %p233 = pneg %p232
      $region50: #{tpu_custom_call.1} parent=5 // pred_check_branch
        %235 = sbr.rel (%p233) target = $region52
      $region51: #{tpu_custom_call.1} parent=5 // pred_region
        %s236 = ssub.s32 %s15, 2
        // Predicated region
        $region53: #{tpu_custom_call.1} parent=51 // pred_check
          %p237 = pneg %p107
        $region54: #{tpu_custom_call.1} parent=51 // pred_check_branch
          %239 = sbr.rel (%p237) target = $region56
        $region55: #{tpu_custom_call.1} parent=51 // pred_region
          %s240 = sand.u32 %s92, 1
          %s241 = scalar_lea.sflag [#allocation4], %s240
          %s242 = sand.u32 %s92, 1
          %s243 = smul.addr %s242, 8
          %s244 = scalar_lea.vmem [#allocation7], %s243
          %246 = dma.done %s241, 128
        $region56: #{tpu_custom_call.1} parent=51 // pred_fallthru
          _
      $region52: #{tpu_custom_call.1} parent=5 // pred_fallthru
        _
    $region6: #{tpu_custom_call.1} parent=1 // loop_footer
      %s19 = sadd.s32 1, %s15
    $region7: #{tpu_custom_call.1} parent=1 // loop_footer_branch
      %14 = sbr.rel target = $region3
    $region8: #{tpu_custom_call.1} parent=1 // loop_exit
      _
    %247 = vsyncpa [#allocation3], 1
    %s248 = scalar_lea.sflag [#allocation3], 1
    %249 = vsyncpa %s248, 1
    %250 = vsyncpa [#allocation4], 1
    %s251 = scalar_lea.sflag [#allocation4], 1
    %252 = vsyncpa %s251, 1
    %253 = vsyncpa [#allocation5], 1
    %s254 = scalar_lea.sflag [#allocation5], 1
    %255 = vsyncpa %s254, 1

</llo_original>
